<compile_context>
chip_gen: v7x
topology: tpu7x:2x2x1
jax: 0.10.0
libtpu: 0.0.40
codegen_flags: <defaults>
</compile_context>

<pallas_src>
import math
import jax
import jax.numpy as jnp
from jax.experimental import pallas as pl
from jax.experimental.pallas import tpu as pltpu

BN_EPS = 1e-5
NEG_INF = -1e30                  # bias mask for padded logit columns
LANE = 128                       # minimum lane padding for hidden/class dims
SUBLANE = 8                      # batch-tile quantum
TB_MAX = 2048                    # big tiles amortize per-grid-step overhead
MIN_SPLIT_TB = 512               # tile still near HBM roofline at this size


def _round_up(x, m):
    return (x + m - 1) // m * m


def _lane_pad(dim):
    # v6e/v7x MXU is 256 wide: once the dim is >= 256, pad to 256 so the
    # matmul N-dimension fills the MXU; smaller dims pad to a single 128-lane
    # group (fine: at those sizes the kernel is HBM/overhead bound anyway).
    q = 256 if dim >= 256 else LANE
    return _round_up(dim, q)


def _vmem_budget_bytes():
    # ~50% of physical VMEM: ~64 MiB on v5e/v6e (128 MiB), ~32 MiB on v7x (64 MiB).
    cap = 64 * 1024 * 1024
    try:
        if hasattr(pltpu, "get_tpu_info"):
            info = pltpu.get_tpu_info()
            cap = int(getattr(info, "vmem_capacity_bytes", cap))
    except Exception:
        pass
    return max(16 * 1024 * 1024, cap // 2)


# ------------------------------- kernel -------------------------------------

def mlp_kernel(
    x_ref,                       # (TB, D)   bf16 (pre-cast in wrapper)
    w0_ref, b0_ref,              # (D,  Hp) bf16, (1, Hp) f32  input layer (BN folded)
    w1_ref, b1_ref,              # (Hp, Hp) bf16, (1, Hp) f32  middle 0 (BN folded)
    w2_ref, b2_ref,              # (Hp, Hp) bf16, (1, Hp) f32  middle 1 (BN folded)
    wl_ref, bl_ref,              # (Hp, Hp) bf16, (1, Hp) f32  latent output
    wc_ref, bc_ref,              # (Hp, Cp) bf16, (1, Cp) f32  classes (pad cols = -1e30)
    alphas_ref,                  # (4,) f32 in SMEM: PReLU slopes
    latent_ref,                  # (TB, H)  out (unpadded lanes)
    logp_ref,                    # (TB, C)  out (unpadded lanes)
):
    H = latent_ref.shape[1]
    C = logp_ref.shape[1]

    def linear_prelu(h_bf16, w_ref, b_ref, k):
        # bf16 operands on the MXU, f32 accumulation; bias + PReLU in f32 (VPU).
        z = jnp.dot(h_bf16, w_ref[...], preferred_element_type=jnp.float32) + b_ref[...]
        a = alphas_ref[k]
        return jnp.where(z >= 0.0, z, a * z)

    # First matmul consumes the bf16 input block directly (no in-kernel cast).
    h = linear_prelu(x_ref[...], w0_ref, b0_ref, 0)            # input layer
    h = linear_prelu(h.astype(jnp.bfloat16), w1_ref, b1_ref, 1)  # middle 0 (dropout=id)
    h = linear_prelu(h.astype(jnp.bfloat16), w2_ref, b2_ref, 2)  # middle 1
    lat = linear_prelu(h.astype(jnp.bfloat16), wl_ref, bl_ref, 3)  # latent output
    latent_ref[...] = lat[:, :H].astype(latent_ref.dtype)

    # classes output: Linear -> log_softmax(dim=1).  Padded columns carry bias
    # -1e30, so exp() of them is exactly 0 and the normalizer is unaffected.
    z = jnp.dot(lat.astype(jnp.bfloat16), wc_ref[...],
                preferred_element_type=jnp.float32) + bc_ref[...]
    m = jnp.max(z, axis=1, keepdims=True)
    s = z - m
    lse = jnp.log(jnp.sum(jnp.exp(s), axis=1, keepdims=True))
    logp_ref[...] = (s[:, :C] - lse).astype(logp_ref.dtype)


# ------------------------------- wrapper -------------------------------------

def _pick_tb(B, D, Hp, H, Cp, C, weight_bytes, vmem_budget):
    """Largest batch tile (multiple of 8, <= TB_MAX) whose rough VMEM footprint
    fits the generation-aware budget; then capped so large batches give >= 2
    parallel grid steps (v7x megacore)."""
    def estimate(tb):
        io = 2 * tb * (2 * D + 4 * H + 4 * C)   # double-buffered x (bf16) + outputs (f32)
        live = 6 * tb * 4 * max(Hp, Cp)         # chained f32 intermediates + bf16 copies
        return 2 * weight_bytes + io + live     # conservative: params double-buffered

    tb = min(TB_MAX, max(SUBLANE, _round_up(B, SUBLANE)))
    while tb > SUBLANE and estimate(tb) > vmem_budget:
        tb = max(SUBLANE, _round_up(tb // 2, SUBLANE))
    if estimate(tb) > vmem_budget:
        # TODO(synk): fall back to K/N tiling of the weight matrices for very
        # large hidden_dim instead of failing outright.
        raise ValueError(
            "MLP parameters + minimum batch tile exceed the VMEM budget "
            f"({estimate(tb)} > {vmem_budget} bytes); hidden_dim too large "
            "for the fully-resident-weights strategy.")

    # v7x has 2 TensorCores and only 'parallel' grid steps are sharded across
    # them: when the batch is big enough, cap TB so the grid has >= 2 steps.
    if B >= 2 * MIN_SPLIT_TB:
        tb = min(tb, max(MIN_SPLIT_TB, _round_up(pl.cdiv(B, 2), SUBLANE)))
    return tb


def mlp_network_forward(x, kernel_params, H, C, *, block_batch=None,
                        out_dtype=jnp.float32):
    """x: (B, D) f32 (cast to bf16 once here).  kernel_params: output of
    fold_and_pad_params.  Returns (latent (B, H), log_probs (B, C)) in
    out_dtype (default f32; pass jnp.bfloat16 if downstream tolerates it to
    halve output writeback).  Eval-mode semantics."""
    (w0, b0, w1, b1, w2, b2, wl, bl, wc, bc, alphas) = kernel_params
    B, D = x.shape
    Hp = w1.shape[0]
    Cp = wc.shape[1]

    x_bf16 = x.astype(jnp.bfloat16)   # one-time cast: halves x HBM->VMEM bytes

    weight_bytes = sum(int(p.size) * p.dtype.itemsize for p in kernel_params)
    vmem_budget = _vmem_budget_bytes()
    if block_batch is not None:
        TB = max(SUBLANE, _round_up(int(block_batch), SUBLANE))
    else:
        TB = _pick_tb(B, D, Hp, H, Cp, C, weight_bytes, vmem_budget)
    grid = (pl.cdiv(B, TB),)

    def batch_spec(cols):
        return pl.BlockSpec((TB, cols), lambda i: (i, 0))

    def resident_spec(arr):
        # Constant block index -> DMA'd once, no re-copy on later grid steps.
        return pl.BlockSpec(arr.shape, lambda i: (0,) * arr.ndim)

    in_specs = [batch_spec(D)]
    for p in (w0, b0, w1, b1, w2, b2, wl, bl, wc, bc):
        in_specs.append(resident_spec(p))
    in_specs.append(pl.BlockSpec(memory_space=pltpu.MemorySpace.SMEM))   # alphas

    # Advisory cost estimate so XLA schedules producers/consumers around the call.
    flops = 2 * B * (D * Hp + 3 * Hp * Hp + Hp * Cp)
    bytes_accessed = (B * D * 2) + weight_bytes + B * (H + C) * jnp.dtype(out_dtype).itemsize
    cost = pl.CostEstimate(flops=int(flops), transcendentals=int(B * (Cp + 1)),
                           bytes_accessed=int(bytes_accessed))

    latent, logp = pl.pallas_call(
        mlp_kernel,
        grid=grid,
        out_shape=(
            jax.ShapeDtypeStruct((B, H), out_dtype),   # unpadded: no wasted writeback
            jax.ShapeDtypeStruct((B, C), out_dtype),
        ),
        in_specs=in_specs,
        out_specs=(batch_spec(H), batch_spec(C)),
        compiler_params=pltpu.CompilerParams(
            dimension_semantics=("parallel",),
            vmem_limit_bytes=vmem_budget,
        ),
        cost_estimate=cost,
    )(x_bf16, w0, b0, w1, b1, w2, b2, wl, bl, wc, bc, alphas)

    return latent, logp


# ------------------------ parameter construction ----------------------------

def make_raw_params(key, input_dim, output_dim, hidden_dim):
    """PyTorch-equivalent parameters (hidden_layers_num=2, eval mode):
    Linear weights pre-transposed to (in, out), BatchNorm1d defaults
    (gamma=1, beta=0, running_mean=0, running_var=1), PReLU slope 0.25."""
    def kaiming_uniform(k, fan_in, fan_out):
        bound = math.sqrt(6.0 / fan_in)          # kaiming_uniform_(fan_in, relu)
        return jax.random.uniform(k, (fan_in, fan_out), jnp.float32, -bound, bound)

    def linear_bias(k, fan_in, fan_out):
        bound = 1.0 / math.sqrt(fan_in)
        return jax.random.uniform(k, (fan_out,), jnp.float32, -bound, bound)

    def bn_defaults(h):
        return dict(gamma=jnp.ones((h,), jnp.float32),
                    beta=jnp.zeros((h,), jnp.float32),
                    rm=jnp.zeros((h,), jnp.float32),
                    rv=jnp.ones((h,), jnp.float32))

    ks = jax.random.split(key, 10)
    alpha = 0.25                                  # nn.PReLU() default
    return dict(
        inp=dict(w=kaiming_uniform(ks[0], input_dim, hidden_dim),
                 b=linear_bias(ks[1], input_dim, hidden_dim),
                 bn=bn_defaults(hidden_dim), alpha=alpha),
        mid0=dict(w=kaiming_uniform(ks[2], hidden_dim, hidden_dim),
                  b=linear_bias(ks[3], hidden_dim, hidden_dim),
                  bn=bn_defaults(hidden_dim), alpha=alpha),
        mid1=dict(w=kaiming_uniform(ks[4], hidden_dim, hidden_dim),
                  b=linear_bias(ks[5], hidden_dim, hidden_dim),
                  bn=bn_defaults(hidden_dim), alpha=alpha),
        lat=dict(w=kaiming_uniform(ks[6], hidden_dim, hidden_dim),
                 b=linear_bias(ks[7], hidden_dim, hidden_dim), alpha=alpha),
        cls=dict(w=kaiming_uniform(ks[8], hidden_dim, output_dim),
                 b=linear_bias(ks[9], hidden_dim, output_dim)),
    )


def fold_and_pad_params(p, input_dim, hidden_dim, output_dim):
    """One-time offline transform:
      * fold eval-mode BatchNorm + bias into the Linear weights (exact),
      * zero-pad hidden/class dims to lane multiples (128, or 256 when >=256)
        (padded class columns get a -1e30 bias so log_softmax ignores them),
      * cast weight matrices to bf16 (biases / PReLU slopes stay f32)."""
    Hp = _lane_pad(hidden_dim)
    Cp = _lane_pad(output_dim)

    def fold(w, b, bn):
        scale = bn['gamma'] / jnp.sqrt(bn['rv'] + BN_EPS)
        return w * scale[None, :], (b - bn['rm']) * scale + bn['beta']

    def pad_w(w, rows, cols):
        return jnp.pad(w, ((0, rows - w.shape[0]),
                           (0, cols - w.shape[1]))).astype(jnp.bfloat16)

    def pad_b(b, cols, fill=0.0):
        return jnp.pad(b, (0, cols - b.shape[0]),
                       constant_values=fill).reshape(1, cols).astype(jnp.float32)

    w0, b0 = fold(p['inp']['w'], p['inp']['b'], p['inp']['bn'])
    w1, b1 = fold(p['mid0']['w'], p['mid0']['b'], p['mid0']['bn'])
    w2, b2 = fold(p['mid1']['w'], p['mid1']['b'], p['mid1']['bn'])
    wl, bl = p['lat']['w'], p['lat']['b']
    wc, bc = p['cls']['w'], p['cls']['b']

    alphas = jnp.array([p['inp']['alpha'], p['mid0']['alpha'],
                        p['mid1']['alpha'], p['lat']['alpha']], dtype=jnp.float32)

    return (
        pad_w(w0, input_dim, Hp), pad_b(b0, Hp),
        pad_w(w1, Hp, Hp),        pad_b(b1, Hp),
        pad_w(w2, Hp, Hp),        pad_b(b2, Hp),
        pad_w(wl, Hp, Hp),        pad_b(bl, Hp),
        pad_w(wc, Hp, Cp),        pad_b(bc, Cp, fill=NEG_INF),
        alphas,
    )


# ------------------------ pure-JAX reference (same math) --------------------

def reference_forward(x_bf16, kernel_params, H, C):
    # NOTE: matches the kernel's bf16-operand / f32-accumulate matmul layout;
    # this intentionally deviates (slightly) from PyTorch's f32 nn.Linear.
    (w0, b0, w1, b1, w2, b2, wl, bl, wc, bc, alphas) = kernel_params

    def linear_prelu(h_bf16, w, b, a):
        z = jnp.dot(h_bf16, w, preferred_element_type=jnp.float32) + b
        return jnp.where(z >= 0.0, z, a * z)

    h = linear_prelu(x_bf16, w0, b0, alphas[0])
    h = linear_prelu(h.astype(jnp.bfloat16), w1, b1, alphas[1])
    h = linear_prelu(h.astype(jnp.bfloat16), w2, b2, alphas[2])
    lat = linear_prelu(h.astype(jnp.bfloat16), wl, bl, alphas[3])
    z = jnp.dot(lat.astype(jnp.bfloat16), wc,
                preferred_element_type=jnp.float32) + bc
    logp = jax.nn.log_softmax(z, axis=1)
    return lat[:, :H], logp[:, :C]


# ----------------------------------- main ------------------------------------

if __name__ == "__main__":
    key = jax.random.PRNGKey(0)
    kx, kp = jax.random.split(key)

    B, INPUT_DIM, HIDDEN_DIM, OUTPUT_DIM = 8, 32, 32, 16
    x = jax.random.normal(kx, (B, INPUT_DIM), jnp.float32)

    raw = make_raw_params(kp, INPUT_DIM, OUTPUT_DIM, HIDDEN_DIM)
    kparams = fold_and_pad_params(raw, INPUT_DIM, HIDDEN_DIM, OUTPUT_DIM)

    latent, log_probs = mlp_network_forward(x, kparams, HIDDEN_DIM, OUTPUT_DIM)
    jax.block_until_ready((latent, log_probs))

    assert latent.shape == (B, HIDDEN_DIM)
    assert log_probs.shape == (B, OUTPUT_DIM)
    # log_softmax rows must exponentiate-sum to ~1 (padded classes masked out)
    assert bool(jnp.all(jnp.abs(jnp.sum(jnp.exp(log_probs), axis=1) - 1.0) < 1e-4))

    # cross-check against a pure-JAX reference using the same folded params
    ref_lat, ref_logp = reference_forward(x.astype(jnp.bfloat16), kparams,
                                          HIDDEN_DIM, OUTPUT_DIM)
    assert bool(jnp.max(jnp.abs(latent - ref_lat)) < 5e-3)
    assert bool(jnp.max(jnp.abs(log_probs - ref_logp)) < 5e-3)

    # multi-step grid check: resident weights across >=2 parallel grid steps
    # (the configuration that lets both v7x TensorCores share the batch).
    B2 = 64
    x2 = jax.random.normal(jax.random.PRNGKey(1), (B2, INPUT_DIM), jnp.float32)
    lat2, logp2 = mlp_network_forward(x2, kparams, HIDDEN_DIM, OUTPUT_DIM,
                                      block_batch=16)
    jax.block_until_ready((lat2, logp2))
    ref_lat2, ref_logp2 = reference_forward(x2.astype(jnp.bfloat16), kparams,
                                            HIDDEN_DIM, OUTPUT_DIM)
    assert lat2.shape == (B2, HIDDEN_DIM) and logp2.shape == (B2, OUTPUT_DIM)
    assert bool(jnp.max(jnp.abs(lat2 - ref_lat2)) < 5e-3)
    assert bool(jnp.max(jnp.abs(logp2 - ref_logp2)) < 5e-3)

    print("KERNEL_OK")
</pallas_src>

<mosaic_0001>
module attributes {stable_mosaic.version = 11 : i64} {
  func.func @mlp_kernel(%arg0: i32, %arg1: memref<8x32xbf16, #tpu.memory_space<vmem>>, %arg2: memref<32x128xbf16, #tpu.memory_space<vmem>>, %arg3: memref<1x128xf32, #tpu.memory_space<vmem>>, %arg4: memref<128x128xbf16, #tpu.memory_space<vmem>>, %arg5: memref<1x128xf32, #tpu.memory_space<vmem>>, %arg6: memref<128x128xbf16, #tpu.memory_space<vmem>>, %arg7: memref<1x128xf32, #tpu.memory_space<vmem>>, %arg8: memref<128x128xbf16, #tpu.memory_space<vmem>>, %arg9: memref<1x128xf32, #tpu.memory_space<vmem>>, %arg10: memref<128x128xbf16, #tpu.memory_space<vmem>>, %arg11: memref<1x128xf32, #tpu.memory_space<vmem>>, %arg12: memref<4xf32, #tpu.memory_space<smem>>, %arg13: memref<8x32xf32, #tpu.memory_space<vmem>>, %arg14: memref<8x16xf32, #tpu.memory_space<vmem>>) attributes {dimension_semantics = [#tpu.dimension_semantics<parallel>], iteration_bounds = array<i64: 1>, scalar_prefetch = 0 : i64, scratch_operands = 0 : i64, tpu.core_type = #tpu.core_type<tc>, window_params = [{transform_indices = @transform_0, window_bounds = array<i64: 8, 32>}, {pipeline_mode = #tpu.pipeline_mode<synchronous>, transform_indices = @transform_1, window_bounds = array<i64: 32, 128>}, {pipeline_mode = #tpu.pipeline_mode<synchronous>, transform_indices = @transform_2, window_bounds = array<i64: 1, 128>}, {pipeline_mode = #tpu.pipeline_mode<synchronous>, transform_indices = @transform_3, window_bounds = array<i64: 128, 128>}, {pipeline_mode = #tpu.pipeline_mode<synchronous>, transform_indices = @transform_4, window_bounds = array<i64: 1, 128>}, {pipeline_mode = #tpu.pipeline_mode<synchronous>, transform_indices = @transform_5, window_bounds = array<i64: 128, 128>}, {pipeline_mode = #tpu.pipeline_mode<synchronous>, transform_indices = @transform_6, window_bounds = array<i64: 1, 128>}, {pipeline_mode = #tpu.pipeline_mode<synchronous>, transform_indices = @transform_7, window_bounds = array<i64: 128, 128>}, {pipeline_mode = #tpu.pipeline_mode<synchronous>, transform_indices = @transform_8, window_bounds = array<i64: 1, 128>}, {pipeline_mode = #tpu.pipeline_mode<synchronous>, transform_indices = @transform_9, window_bounds = array<i64: 128, 128>}, {pipeline_mode = #tpu.pipeline_mode<synchronous>, transform_indices = @transform_10, window_bounds = array<i64: 1, 128>}, {transform_indices = @transform_11, window_bounds = array<i64: 4>}, {transform_indices = @transform_12, window_bounds = array<i64: 8, 32>}, {transform_indices = @transform_13, window_bounds = array<i64: 8, 16>}]} {
    %c0 = arith.constant 0 : index
    %c0_0 = arith.constant 0 : index
    %0 = vector.load %arg1[%c0, %c0_0] : memref<8x32xbf16, #tpu.memory_space<vmem>>, vector<8x32xbf16>
    %c0_1 = arith.constant 0 : index
    %c0_2 = arith.constant 0 : index
    %1 = vector.load %arg2[%c0_1, %c0_2] : memref<32x128xbf16, #tpu.memory_space<vmem>>, vector<32x128xbf16>
    %cst = arith.constant dense<0.000000e+00> : vector<8x128xf32>
    %2 = tpu.matmul %0, %1, %cst {dimension_numbers = #tpu.dot_dimension_numbers<[1], [0], [0], [1], [0, 0, 1, 1], [], []>} : vector<8x32xbf16>, vector<32x128xbf16>, vector<8x128xf32> -> vector<8x128xf32>
    %c0_3 = arith.constant 0 : index
    %c0_4 = arith.constant 0 : index
    %3 = vector.load %arg3[%c0_3, %c0_4] : memref<1x128xf32, #tpu.memory_space<vmem>>, vector<1x128xf32>
    %4 = vector.broadcast %3 : vector<1x128xf32> to vector<8x128xf32>
    %5 = arith.addf %2, %4 : vector<8x128xf32>
    %c0_5 = arith.constant 0 : index
    %6 = memref.load %arg12[%c0_5] : memref<4xf32, #tpu.memory_space<smem>>
    %cst_6 = arith.constant 0.000000e+00 : f32
    %7 = vector.broadcast %cst_6 : f32 to vector<8x128xf32>
    %8 = arith.cmpf oge, %5, %7 : vector<8x128xf32>
    %9 = vector.broadcast %6 : f32 to vector<8x128xf32>
    %10 = arith.mulf %9, %5 : vector<8x128xf32>
    %11 = arith.select %8, %5, %10 : vector<8x128xi1>, vector<8x128xf32>
    %12 = arith.truncf %11 : vector<8x128xf32> to vector<8x128xbf16>
    %c0_7 = arith.constant 0 : index
    %c0_8 = arith.constant 0 : index
    %13 = vector.load %arg4[%c0_7, %c0_8] : memref<128x128xbf16, #tpu.memory_space<vmem>>, vector<128x128xbf16>
    %cst_9 = arith.constant dense<0.000000e+00> : vector<8x128xf32>
    %14 = tpu.matmul %12, %13, %cst_9 {dimension_numbers = #tpu.dot_dimension_numbers<[1], [0], [0], [1], [0, 0, 1, 1], [], []>} : vector<8x128xbf16>, vector<128x128xbf16>, vector<8x128xf32> -> vector<8x128xf32>
    %c0_10 = arith.constant 0 : index
    %c0_11 = arith.constant 0 : index
    %15 = vector.load %arg5[%c0_10, %c0_11] : memref<1x128xf32, #tpu.memory_space<vmem>>, vector<1x128xf32>
    %16 = vector.broadcast %15 : vector<1x128xf32> to vector<8x128xf32>
    %17 = arith.addf %14, %16 : vector<8x128xf32>
    %c1 = arith.constant 1 : index
    %18 = memref.load %arg12[%c1] : memref<4xf32, #tpu.memory_space<smem>>
    %cst_12 = arith.constant 0.000000e+00 : f32
    %19 = vector.broadcast %cst_12 : f32 to vector<8x128xf32>
    %20 = arith.cmpf oge, %17, %19 : vector<8x128xf32>
    %21 = vector.broadcast %18 : f32 to vector<8x128xf32>
    %22 = arith.mulf %21, %17 : vector<8x128xf32>
    %23 = arith.select %20, %17, %22 : vector<8x128xi1>, vector<8x128xf32>
    %24 = arith.truncf %23 : vector<8x128xf32> to vector<8x128xbf16>
    %c0_13 = arith.constant 0 : index
    %c0_14 = arith.constant 0 : index
    %25 = vector.load %arg6[%c0_13, %c0_14] : memref<128x128xbf16, #tpu.memory_space<vmem>>, vector<128x128xbf16>
    %cst_15 = arith.constant dense<0.000000e+00> : vector<8x128xf32>
    %26 = tpu.matmul %24, %25, %cst_15 {dimension_numbers = #tpu.dot_dimension_numbers<[1], [0], [0], [1], [0, 0, 1, 1], [], []>} : vector<8x128xbf16>, vector<128x128xbf16>, vector<8x128xf32> -> vector<8x128xf32>
    %c0_16 = arith.constant 0 : index
    %c0_17 = arith.constant 0 : index
    %27 = vector.load %arg7[%c0_16, %c0_17] : memref<1x128xf32, #tpu.memory_space<vmem>>, vector<1x128xf32>
    %28 = vector.broadcast %27 : vector<1x128xf32> to vector<8x128xf32>
    %29 = arith.addf %26, %28 : vector<8x128xf32>
    %c2 = arith.constant 2 : index
    %30 = memref.load %arg12[%c2] : memref<4xf32, #tpu.memory_space<smem>>
    %cst_18 = arith.constant 0.000000e+00 : f32
    %31 = vector.broadcast %cst_18 : f32 to vector<8x128xf32>
    %32 = arith.cmpf oge, %29, %31 : vector<8x128xf32>
    %33 = vector.broadcast %30 : f32 to vector<8x128xf32>
    %34 = arith.mulf %33, %29 : vector<8x128xf32>
    %35 = arith.select %32, %29, %34 : vector<8x128xi1>, vector<8x128xf32>
    %36 = arith.truncf %35 : vector<8x128xf32> to vector<8x128xbf16>
    %c0_19 = arith.constant 0 : index
    %c0_20 = arith.constant 0 : index
    %37 = vector.load %arg8[%c0_19, %c0_20] : memref<128x128xbf16, #tpu.memory_space<vmem>>, vector<128x128xbf16>
    %cst_21 = arith.constant dense<0.000000e+00> : vector<8x128xf32>
    %38 = tpu.matmul %36, %37, %cst_21 {dimension_numbers = #tpu.dot_dimension_numbers<[1], [0], [0], [1], [0, 0, 1, 1], [], []>} : vector<8x128xbf16>, vector<128x128xbf16>, vector<8x128xf32> -> vector<8x128xf32>
    %c0_22 = arith.constant 0 : index
    %c0_23 = arith.constant 0 : index
    %39 = vector.load %arg9[%c0_22, %c0_23] : memref<1x128xf32, #tpu.memory_space<vmem>>, vector<1x128xf32>
    %40 = vector.broadcast %39 : vector<1x128xf32> to vector<8x128xf32>
    %41 = arith.addf %38, %40 : vector<8x128xf32>
    %c3 = arith.constant 3 : index
    %42 = memref.load %arg12[%c3] : memref<4xf32, #tpu.memory_space<smem>>
    %cst_24 = arith.constant 0.000000e+00 : f32
    %43 = vector.broadcast %cst_24 : f32 to vector<8x128xf32>
    %44 = arith.cmpf oge, %41, %43 : vector<8x128xf32>
    %45 = vector.broadcast %42 : f32 to vector<8x128xf32>
    %46 = arith.mulf %45, %41 : vector<8x128xf32>
    %47 = arith.select %44, %41, %46 : vector<8x128xi1>, vector<8x128xf32>
    %48 = vector.extract_strided_slice %47 {offsets = [0, 0], sizes = [8, 32], strides = [1, 1]} : vector<8x128xf32> to vector<8x32xf32>
    %c0_25 = arith.constant 0 : index
    %c0_26 = arith.constant 0 : index
    %49 = vector.load %arg13[%c0_25, %c0_26] : memref<8x32xf32, #tpu.memory_space<vmem>>, vector<8x32xf32>
    tpu.vector_store %arg13[%c0_25, %c0_26], %48 {strides = array<i32>} : memref<8x32xf32, #tpu.memory_space<vmem>>, vector<8x32xf32>,
    %50 = arith.truncf %47 : vector<8x128xf32> to vector<8x128xbf16>
    %c0_27 = arith.constant 0 : index
    %c0_28 = arith.constant 0 : index
    %51 = vector.load %arg10[%c0_27, %c0_28] : memref<128x128xbf16, #tpu.memory_space<vmem>>, vector<128x128xbf16>
    %cst_29 = arith.constant dense<0.000000e+00> : vector<8x128xf32>
    %52 = tpu.matmul %50, %51, %cst_29 {dimension_numbers = #tpu.dot_dimension_numbers<[1], [0], [0], [1], [0, 0, 1, 1], [], []>} : vector<8x128xbf16>, vector<128x128xbf16>, vector<8x128xf32> -> vector<8x128xf32>
    %c0_30 = arith.constant 0 : index
    %c0_31 = arith.constant 0 : index
    %53 = vector.load %arg11[%c0_30, %c0_31] : memref<1x128xf32, #tpu.memory_space<vmem>>, vector<1x128xf32>
    %54 = vector.broadcast %53 : vector<1x128xf32> to vector<8x128xf32>
    %55 = arith.addf %52, %54 : vector<8x128xf32>
    %cst_32 = arith.constant dense<0xFF800000> : vector<8xf32>
    %56 = vector.multi_reduction <maximumf>, %55, %cst_32 [1] : vector<8x128xf32> to vector<8xf32>
    %57 = vector.shape_cast %56 : vector<8xf32> to vector<8x1xf32>
    %58 = vector.broadcast %57 : vector<8x1xf32> to vector<8x128xf32>
    %59 = arith.subf %55, %58 : vector<8x128xf32>
    %60 = math.exp %59 : vector<8x128xf32>
    %cst_33 = arith.constant dense<0.000000e+00> : vector<8xf32>
    %61 = vector.multi_reduction <add>, %60, %cst_33 [1] : vector<8x128xf32> to vector<8xf32>
    %62 = vector.shape_cast %61 : vector<8xf32> to vector<8x1xf32>
    %63 = math.log %62 : vector<8x1xf32>
    %64 = vector.extract_strided_slice %59 {offsets = [0, 0], sizes = [8, 16], strides = [1, 1]} : vector<8x128xf32> to vector<8x16xf32>
    %65 = vector.broadcast %63 : vector<8x1xf32> to vector<8x16xf32>
    %66 = arith.subf %64, %65 : vector<8x16xf32>
    %c0_34 = arith.constant 0 : index
    %c0_35 = arith.constant 0 : index
    %67 = vector.load %arg14[%c0_34, %c0_35] : memref<8x16xf32, #tpu.memory_space<vmem>>, vector<8x16xf32>
    tpu.vector_store %arg14[%c0_34, %c0_35], %66 {strides = array<i32>} : memref<8x16xf32, #tpu.memory_space<vmem>>, vector<8x16xf32>,
    return
  }
  func.func @transform_0(%arg0: i32) -> (i32, i32) {
    %c0_i32 = arith.constant 0 : i32
    %c0_i32_0 = arith.constant 0 : i32
    return %arg0, %c0_i32 : i32, i32
  }
  func.func @transform_1(%arg0: i32) -> (i32, i32) {
    %c0_i32 = arith.constant 0 : i32
    %c0_i32_0 = arith.constant 0 : i32
    %c0_i32_1 = arith.constant 0 : i32
    return %c0_i32, %c0_i32_0 : i32, i32
  }
  func.func @transform_2(%arg0: i32) -> (i32, i32) {
    %c0_i32 = arith.constant 0 : i32
    %c0_i32_0 = arith.constant 0 : i32
    %c0_i32_1 = arith.constant 0 : i32
    return %c0_i32, %c0_i32_0 : i32, i32
  }
  func.func @transform_3(%arg0: i32) -> (i32, i32) {
    %c0_i32 = arith.constant 0 : i32
    %c0_i32_0 = arith.constant 0 : i32
    %c0_i32_1 = arith.constant 0 : i32
    return %c0_i32, %c0_i32_0 : i32, i32
  }
  func.func @transform_4(%arg0: i32) -> (i32, i32) {
    %c0_i32 = arith.constant 0 : i32
    %c0_i32_0 = arith.constant 0 : i32
    %c0_i32_1 = arith.constant 0 : i32
    return %c0_i32, %c0_i32_0 : i32, i32
  }
  func.func @transform_5(%arg0: i32) -> (i32, i32) {
    %c0_i32 = arith.constant 0 : i32
    %c0_i32_0 = arith.constant 0 : i32
    %c0_i32_1 = arith.constant 0 : i32
    return %c0_i32, %c0_i32_0 : i32, i32
  }
  func.func @transform_6(%arg0: i32) -> (i32, i32) {
    %c0_i32 = arith.constant 0 : i32
    %c0_i32_0 = arith.constant 0 : i32
    %c0_i32_1 = arith.constant 0 : i32
    return %c0_i32, %c0_i32_0 : i32, i32
  }
  func.func @transform_7(%arg0: i32) -> (i32, i32) {
    %c0_i32 = arith.constant 0 : i32
    %c0_i32_0 = arith.constant 0 : i32
    %c0_i32_1 = arith.constant 0 : i32
    return %c0_i32, %c0_i32_0 : i32, i32
  }
  func.func @transform_8(%arg0: i32) -> (i32, i32) {
    %c0_i32 = arith.constant 0 : i32
    %c0_i32_0 = arith.constant 0 : i32
    %c0_i32_1 = arith.constant 0 : i32
    return %c0_i32, %c0_i32_0 : i32, i32
  }
  func.func @transform_9(%arg0: i32) -> (i32, i32) {
    %c0_i32 = arith.constant 0 : i32
    %c0_i32_0 = arith.constant 0 : i32
    %c0_i32_1 = arith.constant 0 : i32
    return %c0_i32, %c0_i32_0 : i32, i32
  }
  func.func @transform_10(%arg0: i32) -> (i32, i32) {
    %c0_i32 = arith.constant 0 : i32
    %c0_i32_0 = arith.constant 0 : i32
    %c0_i32_1 = arith.constant 0 : i32
    return %c0_i32, %c0_i32_0 : i32, i32
  }
  func.func @transform_11(%arg0: i32) -> i32 {
    %c0_i32 = arith.constant 0 : i32
    %c0_i32_0 = arith.constant 0 : i32
    return %c0_i32 : i32
  }
  func.func @transform_12(%arg0: i32) -> (i32, i32) {
    %c0_i32 = arith.constant 0 : i32
    %c0_i32_0 = arith.constant 0 : i32
    return %arg0, %c0_i32 : i32, i32
  }
  func.func @transform_13(%arg0: i32) -> (i32, i32) {
    %c0_i32 = arith.constant 0 : i32
    %c0_i32_0 = arith.constant 0 : i32
    return %arg0, %c0_i32 : i32, i32
  }
}

</mosaic_0001>

<llo_original>
// kernel: tpu_custom_call.1
$region0: #{tpu_custom_call.1}
  #allocation0 [shape = 'u32[]', space=smem, size = 0x4, offset = 0x4, fixed_abs, tag = 'smem constant byte address 0x4 - core index']
  #allocation1 [shape = 'u32[144,128]{1,0:T(1,128)}', space=vmem, size = 0x12000, scoped, tag = 'internal scratch']
  %s0 = inlined_call_operand.hbm [shape: bf16[8,32], index: 0, kind: input, shape index: {}]
  %s1 = inlined_call_operand.hbm [shape: bf16[32,128], index: 1, kind: input, shape index: {}]
  %s2 = inlined_call_operand.vmem [shape: f32[1,128], index: 2, kind: input, shape index: {}]
  %s3 = inlined_call_operand.hbm [shape: bf16[128,128], index: 3, kind: input, shape index: {}]
  %s4 = inlined_call_operand.vmem [shape: f32[1,128], index: 4, kind: input, shape index: {}]
  %s5 = inlined_call_operand.hbm [shape: bf16[128,128], index: 5, kind: input, shape index: {}]
  %s6 = inlined_call_operand.vmem [shape: f32[1,128], index: 6, kind: input, shape index: {}]
  %s7 = inlined_call_operand.hbm [shape: bf16[128,128], index: 7, kind: input, shape index: {}]
  %s8 = inlined_call_operand.vmem [shape: f32[1,128], index: 8, kind: input, shape index: {}]
  %s9 = inlined_call_operand.hbm [shape: bf16[128,128], index: 9, kind: input, shape index: {}]
  %s10 = inlined_call_operand.vmem [shape: f32[1,128], index: 10, kind: input, shape index: {}]
  %s11 = inlined_call_operand.vmem [shape: f32[4], index: 11, kind: input, shape index: {}]
  %s12 = inlined_call_operand.hbm [shape: f32[8,32], index: 12, kind: output, shape index: {0}]
  %s13 = inlined_call_operand.hbm [shape: f32[8,16], index: 13, kind: output, shape index: {1}]
  %14 = xla_tuple %s12, %s13
  %s15 = sld [smem:[#allocation0]]
  $region94: #{tpu_custom_call.1} parent=0
    _
  %s17 = ssub.s32 1, %s15
  %s18 = scalar_select 0, %s17, %s15
  $region1: #{tpu_custom_call.1} parent=0
    #allocation2 [shape = 'u8[2048]{0}', space=vmem, size = 0x800, scoped, tag = 'input window, operand 0, single buffered']
    #allocation3 [shape = 's32[1]{0}', space=sflag, size = 0x4, scoped, tag = 'scoped memory for tpu_custom_call.1']
    #allocation4 [shape = 's32[1]{0}', space=sflag, size = 0x4, scoped, tag = 'scoped memory for tpu_custom_call.1']
    #allocation5 [shape = 's32[1]{0}', space=sflag, size = 0x4, scoped, tag = 'scoped memory for tpu_custom_call.1']
    #allocation6 [shape = 'u8[8192]{0}', space=vmem, size = 0x2000, scoped, tag = 'input window, operand 1, single buffered']
    #allocation7 [shape = 's32[1]{0}', space=sflag, size = 0x4, scoped, tag = 'scoped memory for tpu_custom_call.1']
    #allocation8 [shape = 'u8[32768]{0}', space=vmem, size = 0x8000, scoped, tag = 'input window, operand 3, single buffered']
    #allocation9 [shape = 'u8[32768]{0}', space=vmem, size = 0x8000, scoped, tag = 'input window, operand 5, single buffered']
    #allocation10 [shape = 's32[1]{0}', space=sflag, size = 0x4, scoped, tag = 'scoped memory for tpu_custom_call.1']
    #allocation11 [shape = 'u8[32768]{0}', space=vmem, size = 0x8000, scoped, tag = 'input window, operand 7, single buffered']
    #allocation12 [shape = 'u8[32768]{0}', space=vmem, size = 0x8000, scoped, tag = 'input window, operand 9, single buffered']
    #allocation13 [shape = 's32[1]{0}', space=sflag, size = 0x4, scoped, tag = 'scoped memory for tpu_custom_call.1']
    #allocation14 [shape = 'u8[512]{0}', space=smem, size = 0x200, scoped, tag = 'input window, operand 11, single buffered']
    #allocation15 [shape = 'u8[4096]{0}', space=vmem, size = 0x1000, scoped, tag = 'output window, operand 0, single buffered']
    #allocation16 [shape = 'u8[4096]{0}', space=vmem, size = 0x1000, scoped, tag = 'output window, operand 1, single buffered']
    #allocation17 [shape = 's32[1]{0}', space=sflag, size = 0x4, scoped, tag = 'scoped memory for tpu_custom_call.1']
    %19 = vsyncpa [#allocation3], 0
    %20 = vsyncpa [#allocation7], 0
    %21 = vsyncpa [#allocation10], 0
    %22 = vsyncpa [#allocation13], 0
    %23 = vsyncpa [#allocation5], 0
    %24 = vsyncpa [#allocation4], 0
    %25 = vsyncpa [#allocation17], 0
    // Predicated region
    $region2: #{tpu_custom_call.1} parent=1 // pred_check
      _
    $region3: #{tpu_custom_call.1} parent=1 // pred_check_branch
      %27 = sbr.rel (0) target = $region5
    $region4: #{tpu_custom_call.1} parent=1 // pred_region
      %s29 = ssub.s32 64, 64
      %30 = vsyncadd [#allocation3], %s29
      %s32 = sshll.u32 [#allocation2], 4
      %s33 = int_to_ptr.vmem [resolvable:$true] %s32
      %35 = dma.hbm_to_vmem [thread:$0]  %s0, 64, %s33, [#allocation3]
    $region5: #{tpu_custom_call.1} parent=1 // pred_fallthru
      _
    // Predicated region
    $region6: #{tpu_custom_call.1} parent=1 // pred_check
      _
    $region7: #{tpu_custom_call.1} parent=1 // pred_check_branch
      %37 = sbr.rel (0) target = $region9
    $region8: #{tpu_custom_call.1} parent=1 // pred_region
      %s39 = ssub.s32 256, 256
      %40 = vsyncadd [#allocation7], %s39
      %s41 = sshll.u32 [#allocation6], 4
      %s42 = int_to_ptr.vmem [resolvable:$true] %s41
      %47 = dma.hbm_to_vmem [thread:$0]  %s1, 256, %s42, [#allocation7], 64, 64, 4
    $region9: #{tpu_custom_call.1} parent=1 // pred_fallthru
      _
    // Predicated region
    $region10: #{tpu_custom_call.1} parent=1 // pred_check
      _
    $region11: #{tpu_custom_call.1} parent=1 // pred_check_branch
      %49 = sbr.rel (0) target = $region13
    $region12: #{tpu_custom_call.1} parent=1 // pred_region
      _
    $region13: #{tpu_custom_call.1} parent=1 // pred_fallthru
      _
    // Predicated region
    $region14: #{tpu_custom_call.1} parent=1 // pred_check
      _
    $region15: #{tpu_custom_call.1} parent=1 // pred_check_branch
      %51 = sbr.rel (0) target = $region17
    $region16: #{tpu_custom_call.1} parent=1 // pred_region
      %s53 = ssub.s32 1024, 1024
      %54 = vsyncadd [#allocation7], %s53
      %s55 = sshll.u32 [#allocation8], 4
      %s56 = int_to_ptr.vmem [resolvable:$true] %s55
      %61 = dma.hbm_to_vmem [thread:$0]  %s3, 1024, %s56, [#allocation7], 64, 64, 4
    $region17: #{tpu_custom_call.1} parent=1 // pred_fallthru
      _
    // Predicated region
    $region18: #{tpu_custom_call.1} parent=1 // pred_check
      _
    $region19: #{tpu_custom_call.1} parent=1 // pred_check_branch
      %63 = sbr.rel (0) target = $region21
    $region20: #{tpu_custom_call.1} parent=1 // pred_region
      _
    $region21: #{tpu_custom_call.1} parent=1 // pred_fallthru
      _
    // Predicated region
    $region22: #{tpu_custom_call.1} parent=1 // pred_check
      _
    $region23: #{tpu_custom_call.1} parent=1 // pred_check_branch
      %65 = sbr.rel (0) target = $region25
    $region24: #{tpu_custom_call.1} parent=1 // pred_region
      %s67 = ssub.s32 1024, 1024
      %68 = vsyncadd [#allocation10], %s67
      %s69 = sshll.u32 [#allocation9], 4
      %s70 = int_to_ptr.vmem [resolvable:$true] %s69
      %75 = dma.hbm_to_vmem [thread:$0]  %s5, 1024, %s70, [#allocation10], 64, 64, 4
    $region25: #{tpu_custom_call.1} parent=1 // pred_fallthru
      _
    // Predicated region
    $region26: #{tpu_custom_call.1} parent=1 // pred_check
      _
    $region27: #{tpu_custom_call.1} parent=1 // pred_check_branch
      %77 = sbr.rel (0) target = $region29
    $region28: #{tpu_custom_call.1} parent=1 // pred_region
      _
    $region29: #{tpu_custom_call.1} parent=1 // pred_fallthru
      _
    // Predicated region
    $region30: #{tpu_custom_call.1} parent=1 // pred_check
      _
    $region31: #{tpu_custom_call.1} parent=1 // pred_check_branch
      %79 = sbr.rel (0) target = $region33
    $region32: #{tpu_custom_call.1} parent=1 // pred_region
      %s81 = ssub.s32 1024, 1024
      %82 = vsyncadd [#allocation10], %s81
      %s83 = sshll.u32 [#allocation11], 4
      %s84 = int_to_ptr.vmem [resolvable:$true] %s83
      %89 = dma.hbm_to_vmem [thread:$0]  %s7, 1024, %s84, [#allocation10], 64, 64, 4
    $region33: #{tpu_custom_call.1} parent=1 // pred_fallthru
      _
    // Predicated region
    $region34: #{tpu_custom_call.1} parent=1 // pred_check
      _
    $region35: #{tpu_custom_call.1} parent=1 // pred_check_branch
      %91 = sbr.rel (0) target = $region37
    $region36: #{tpu_custom_call.1} parent=1 // pred_region
      _
    $region37: #{tpu_custom_call.1} parent=1 // pred_fallthru
      _
    // Predicated region
    $region38: #{tpu_custom_call.1} parent=1 // pred_check
      _
    $region39: #{tpu_custom_call.1} parent=1 // pred_check_branch
      %93 = sbr.rel (0) target = $region41
    $region40: #{tpu_custom_call.1} parent=1 // pred_region
      %s95 = ssub.s32 1024, 1024
      %96 = vsyncadd [#allocation13], %s95
      %s97 = sshll.u32 [#allocation12], 4
      %s98 = int_to_ptr.vmem [resolvable:$true] %s97
      %103 = dma.hbm_to_vmem [thread:$0]  %s9, 1024, %s98, [#allocation13], 64, 64, 4
    $region41: #{tpu_custom_call.1} parent=1 // pred_fallthru
      _
    // Predicated region
    $region42: #{tpu_custom_call.1} parent=1 // pred_check
      _
    $region43: #{tpu_custom_call.1} parent=1 // pred_check_branch
      %105 = sbr.rel (0) target = $region45
    $region44: #{tpu_custom_call.1} parent=1 // pred_region
      _
    $region45: #{tpu_custom_call.1} parent=1 // pred_fallthru
      _
    // Predicated region
    $region46: #{tpu_custom_call.1} parent=1 // pred_check
      _
    $region47: #{tpu_custom_call.1} parent=1 // pred_check_branch
      %107 = sbr.rel (0) target = $region49
    $region48: #{tpu_custom_call.1} parent=1 // pred_region
      %s109 = ssub.s32 16, 16
      %110 = vsyncadd [#allocation5], %s109
      %s112 = sshll.u32 %s11, 4
      %s113 = int_to_ptr.vmem [resolvable:$true] %s112
      %115 = dma.vmem_to_smem %s113, 16, [#allocation14], [#allocation5]
    $region49: #{tpu_custom_call.1} parent=1 // pred_fallthru
      _
    // Predicated region
    $region50: #{tpu_custom_call.1} parent=1 // pred_check
      _
    $region51: #{tpu_custom_call.1} parent=1 // pred_check_branch
      %117 = sbr.rel (0) target = $region53
    $region52: #{tpu_custom_call.1} parent=1 // pred_region
      %118 = dma.done [#allocation3], 64
    $region53: #{tpu_custom_call.1} parent=1 // pred_fallthru
      _
    // Predicated region
    $region54: #{tpu_custom_call.1} parent=1 // pred_check
      _
    $region55: #{tpu_custom_call.1} parent=1 // pred_check_branch
      %120 = sbr.rel (0) target = $region57
    $region56: #{tpu_custom_call.1} parent=1 // pred_region
      %121 = dma.done [#allocation7], 256
    $region57: #{tpu_custom_call.1} parent=1 // pred_fallthru
      _
    // Predicated region
    $region58: #{tpu_custom_call.1} parent=1 // pred_check
      _
    $region59: #{tpu_custom_call.1} parent=1 // pred_check_branch
      %123 = sbr.rel (0) target = $region61
    $region60: #{tpu_custom_call.1} parent=1 // pred_region
      %124 = dma.done [#allocation7], 1024
    $region61: #{tpu_custom_call.1} parent=1 // pred_fallthru
      _
    // Predicated region
    $region62: #{tpu_custom_call.1} parent=1 // pred_check
      _
    $region63: #{tpu_custom_call.1} parent=1 // pred_check_branch
      %126 = sbr.rel (0) target = $region65
    $region64: #{tpu_custom_call.1} parent=1 // pred_region
      %127 = dma.done [#allocation10], 1024
    $region65: #{tpu_custom_call.1} parent=1 // pred_fallthru
      _
    // Predicated region
    $region66: #{tpu_custom_call.1} parent=1 // pred_check
      _
    $region67: #{tpu_custom_call.1} parent=1 // pred_check_branch
      %129 = sbr.rel (0) target = $region69
    $region68: #{tpu_custom_call.1} parent=1 // pred_region
      %130 = dma.done [#allocation10], 1024
    $region69: #{tpu_custom_call.1} parent=1 // pred_fallthru
      _
    // Predicated region
    $region70: #{tpu_custom_call.1} parent=1 // pred_check
      _
    $region71: #{tpu_custom_call.1} parent=1 // pred_check_branch
      %132 = sbr.rel (0) target = $region73
    $region72: #{tpu_custom_call.1} parent=1 // pred_region
      %133 = dma.done [#allocation13], 1024
    $region73: #{tpu_custom_call.1} parent=1 // pred_fallthru
      _
    // Predicated region
    $region74: #{tpu_custom_call.1} parent=1 // pred_check
      _
    $region75: #{tpu_custom_call.1} parent=1 // pred_check_branch
      %135 = sbr.rel (0) target = $region77
    $region76: #{tpu_custom_call.1} parent=1 // pred_region
      %136 = dma.done [#allocation5], 16
    $region77: #{tpu_custom_call.1} parent=1 // pred_fallthru
      _
    %137 = sfence
    %v139 = vld [vmem:[#allocation2] sm:$0xf]
    %v140 = vld [vmem:[#allocation6] sm:$0xf]
    %v141 = vld [vmem:[#allocation6 + $0x4] sm:$0xf]
    %v142 = vld [vmem:[#allocation6 + $0x8] sm:$0xf]
    %v143 = vld [vmem:[#allocation6 + $0xc] sm:$0xf]
    %v144 = vld [vmem:[%s2] sm:$0x1]
    %v146 = vlaneseq
    %v147 = vshrl.u32 %v146, 7
    %v148 = vsub.s32 0, %v147
    %v149 = vrot.slane %v144, %v148
    %v155 = vunpack.c.l.b16 %v140
    %v156 = vunpack.c.l.b16 %v141
    %v157 = vunpack.c.l.b16 %v142
    %v158 = vunpack.c.l.b16 %v143
    %v159 = vpack.c.b16 %v156, %v155
    %v160 = vpack.c.b16 %v158, %v157
    %vm163 = vcmask 261120
    %v165 = vsel %vm163, %v139, 0
    %167 = vmatprep.subr.bf16.mxu0 0
    %168 = vmatpush1.bf16.msra.mxu0 %v159
    %169 = vmatprep.subr.bf16.mxu0 0
    %170 = vmatpush1.bf16.msra.mxu0 %v160
    %171 = vmatprep.subr.bf16.mxu0 0
    %172 = vmatpush1.bf16.msra.mxu0 0
    %173 = vmatprep.subr.bf16.mxu0 0
    %174 = vmatpush1.bf16.msra.mxu0 0
    %175 = vmatprep.subr.bf16.mxu0 0
    %176 = vmatpush1.bf16.msra.mxu0 0
    %177 = vmatprep.subr.bf16.mxu0 0
    %178 = vmatpush1.bf16.msra.mxu0 0
    %179 = vmatprep.subr.bf16.mxu0 0
    %180 = vmatpush1.bf16.msra.mxu0 0
    %181 = vmatprep.subr.bf16.mxu0 0
    %182 = vmatpush1.bf16.msra.mxu0 0
    %183 = vmatprep.subr.bf16.mxu0 0
    %184 = vmatpush1.bf16.msra.mxu0 0
    %185 = vmatprep.subr.bf16.mxu0 0
    %186 = vmatpush1.bf16.msra.mxu0 0
    %187 = vmatprep.subr.bf16.mxu0 0
    %188 = vmatpush1.bf16.msra.mxu0 0
    %189 = vmatprep.subr.bf16.mxu0 0
    %190 = vmatpush1.bf16.msra.mxu0 0
    %191 = vmatprep.subr.bf16.mxu0 0
    %192 = vmatpush1.bf16.msra.mxu0 0
    %193 = vmatprep.subr.bf16.mxu0 0
    %194 = vmatpush1.bf16.msra.mxu0 0
    %195 = vmatprep.subr.bf16.mxu0 0
    %196 = vmatpush1.bf16.msra.mxu0 0
    %197 = vmatprep.subr.bf16.mxu0 0
    %198 = vmatpush1.bf16.msra.mxu0 0
    %199 = vmatprep.mubr.bf16.mxu0 0
    %200 = vmatmul.mubr.bf16.gmra.mrb[0].mxu0 %v165
    %v201 = vpop.f32.mrb[0].mxu0
    %v202 = vadd.f32 %v149, %v201
    %v203 = vpop.f32.mrb[0].mxu0
    %v204 = vpop.f32.mrb[0].mxu0
    %v205 = vpop.f32.mrb[0].mxu0
    %206 = vdwg.mxu0
    %s207 = sld [smem:[#allocation14]]
    %vm208 = vcmp.ge.f32.partialorder %v202, 0.0
    %v209 = vstv %s207
    %v210 = vmul.f32 %v209, %v202
    %v211 = vsel %vm208, %v202, %v210
    %v212 = vpack.c.bf16 %v211, %v211
    %v213 = vld [vmem:[#allocation8] sm:$0xf]
    %v214 = vld [vmem:[#allocation8 + $0x4] sm:$0xf]
    %v215 = vld [vmem:[#allocation8 + $0x8] sm:$0xf]
    %v216 = vld [vmem:[#allocation8 + $0xc] sm:$0xf]
    %v217 = vld [vmem:[#allocation8 + $0x10] sm:$0xf]
    %v218 = vld [vmem:[#allocation8 + $0x14] sm:$0xf]
    %v219 = vld [vmem:[#allocation8 + $0x18] sm:$0xf]
    %v220 = vld [vmem:[#allocation8 + $0x1c] sm:$0xf]
    %v221 = vld [vmem:[#allocation8 + $0x20] sm:$0xf]
    %v222 = vld [vmem:[#allocation8 + $0x24] sm:$0xf]
    %v223 = vld [vmem:[#allocation8 + $0x28] sm:$0xf]
    %v224 = vld [vmem:[#allocation8 + $0x2c] sm:$0xf]
    %v225 = vld [vmem:[#allocation8 + $0x30] sm:$0xf]
    %v226 = vld [vmem:[#allocation8 + $0x34] sm:$0xf]
    %v227 = vld [vmem:[#allocation8 + $0x38] sm:$0xf]
    %v228 = vld [vmem:[#allocation8 + $0x3c] sm:$0xf]
    %v229 = vld [vmem:[%s4] sm:$0x1]
    %v231 = vlaneseq
    %v232 = vshrl.u32 %v231, 7
    %v233 = vsub.s32 0, %v232
    %v234 = vrot.slane %v229, %v233
    %v252 = vunpack.c.l.b16 %v213
    %v253 = vunpack.c.l.b16 %v214
    %v254 = vunpack.c.l.b16 %v215
    %v255 = vunpack.c.l.b16 %v216
    %v256 = vunpack.c.l.b16 %v217
    %v257 = vunpack.c.l.b16 %v218
    %v258 = vunpack.c.l.b16 %v219
    %v259 = vunpack.c.l.b16 %v220
    %v260 = vunpack.c.l.b16 %v221
    %v261 = vunpack.c.l.b16 %v222
    %v262 = vunpack.c.l.b16 %v223
    %v263 = vunpack.c.l.b16 %v224
    %v264 = vunpack.c.l.b16 %v225
    %v265 = vunpack.c.l.b16 %v226
    %v266 = vunpack.c.l.b16 %v227
    %v267 = vunpack.c.l.b16 %v228
    %v268 = vpack.c.b16 %v253, %v252
    %v269 = vpack.c.b16 %v255, %v254
    %v270 = vpack.c.b16 %v257, %v256
    %v271 = vpack.c.b16 %v259, %v258
    %v272 = vpack.c.b16 %v261, %v260
    %v273 = vpack.c.b16 %v263, %v262
    %v274 = vpack.c.b16 %v265, %v264
    %v275 = vpack.c.b16 %v267, %v266
    %284 = vmatprep.subr.bf16.mxu0 0
    %285 = vmatpush1.bf16.msra.mxu0 %v268
    %286 = vmatprep.subr.bf16.mxu0 0
    %287 = vmatpush1.bf16.msra.mxu0 %v269
    %288 = vmatprep.subr.bf16.mxu0 0
    %289 = vmatpush1.bf16.msra.mxu0 %v270
    %290 = vmatprep.subr.bf16.mxu0 0
    %291 = vmatpush1.bf16.msra.mxu0 %v271
    %292 = vmatprep.subr.bf16.mxu0 0
    %293 = vmatpush1.bf16.msra.mxu0 %v272
    %294 = vmatprep.subr.bf16.mxu0 0
    %295 = vmatpush1.bf16.msra.mxu0 %v273
    %296 = vmatprep.subr.bf16.mxu0 0
    %297 = vmatpush1.bf16.msra.mxu0 %v274
    %298 = vmatprep.subr.bf16.mxu0 0
    %299 = vmatpush1.bf16.msra.mxu0 %v275
    %300 = vmatprep.subr.bf16.mxu0 0
    %301 = vmatpush1.bf16.msra.mxu0 0
    %302 = vmatprep.subr.bf16.mxu0 0
    %303 = vmatpush1.bf16.msra.mxu0 0
    %304 = vmatprep.subr.bf16.mxu0 0
    %305 = vmatpush1.bf16.msra.mxu0 0
    %306 = vmatprep.subr.bf16.mxu0 0
    %307 = vmatpush1.bf16.msra.mxu0 0
    %308 = vmatprep.subr.bf16.mxu0 0
    %309 = vmatpush1.bf16.msra.mxu0 0
    %310 = vmatprep.subr.bf16.mxu0 0
    %311 = vmatpush1.bf16.msra.mxu0 0
    %312 = vmatprep.subr.bf16.mxu0 0
    %313 = vmatpush1.bf16.msra.mxu0 0
    %314 = vmatprep.subr.bf16.mxu0 0
    %315 = vmatpush1.bf16.msra.mxu0 0
    %316 = vmatprep.mubr.bf16.mxu0 0
    %317 = vmatmul.mubr.bf16.gmra.mrb[0].mxu0 %v212
    %v318 = vpop.f32.mrb[0].mxu0
    %v319 = vadd.f32 %v234, %v318
    %v320 = vpop.f32.mrb[0].mxu0
    %v321 = vpop.f32.mrb[0].mxu0
    %v322 = vpop.f32.mrb[0].mxu0
    %323 = vdwg.mxu0
    %s324 = sld [smem:[#allocation14 + $0x1]]
    %vm325 = vcmp.ge.f32.partialorder %v319, 0.0
    %v326 = vstv %s324
    %v327 = vmul.f32 %v326, %v319
    %v328 = vsel %vm325, %v319, %v327
    %v329 = vpack.c.bf16 %v328, %v328
    %v330 = vld [vmem:[#allocation9] sm:$0xf]
    %v331 = vld [vmem:[#allocation9 + $0x4] sm:$0xf]
    %v332 = vld [vmem:[#allocation9 + $0x8] sm:$0xf]
    %v333 = vld [vmem:[#allocation9 + $0xc] sm:$0xf]
    %v334 = vld [vmem:[#allocation9 + $0x10] sm:$0xf]
    %v335 = vld [vmem:[#allocation9 + $0x14] sm:$0xf]
    %v336 = vld [vmem:[#allocation9 + $0x18] sm:$0xf]
    %v337 = vld [vmem:[#allocation9 + $0x1c] sm:$0xf]
    %v338 = vld [vmem:[#allocation9 + $0x20] sm:$0xf]
    %v339 = vld [vmem:[#allocation9 + $0x24] sm:$0xf]
    %v340 = vld [vmem:[#allocation9 + $0x28] sm:$0xf]
    %v341 = vld [vmem:[#allocation9 + $0x2c] sm:$0xf]
    %v342 = vld [vmem:[#allocation9 + $0x30] sm:$0xf]
    %v343 = vld [vmem:[#allocation9 + $0x34] sm:$0xf]
    %v344 = vld [vmem:[#allocation9 + $0x38] sm:$0xf]
    %v345 = vld [vmem:[#allocation9 + $0x3c] sm:$0xf]
    %v346 = vld [vmem:[%s6] sm:$0x1]
    %v348 = vlaneseq
    %v349 = vshrl.u32 %v348, 7
    %v350 = vsub.s32 0, %v349
    %v351 = vrot.slane %v346, %v350
    %v369 = vunpack.c.l.b16 %v330
    %v370 = vunpack.c.l.b16 %v331
    %v371 = vunpack.c.l.b16 %v332
    %v372 = vunpack.c.l.b16 %v333
    %v373 = vunpack.c.l.b16 %v334
    %v374 = vunpack.c.l.b16 %v335
    %v375 = vunpack.c.l.b16 %v336
    %v376 = vunpack.c.l.b16 %v337
    %v377 = vunpack.c.l.b16 %v338
    %v378 = vunpack.c.l.b16 %v339
    %v379 = vunpack.c.l.b16 %v340
    %v380 = vunpack.c.l.b16 %v341
    %v381 = vunpack.c.l.b16 %v342
    %v382 = vunpack.c.l.b16 %v343
    %v383 = vunpack.c.l.b16 %v344
    %v384 = vunpack.c.l.b16 %v345
    %v385 = vpack.c.b16 %v370, %v369
    %v386 = vpack.c.b16 %v372, %v371
    %v387 = vpack.c.b16 %v374, %v373
    %v388 = vpack.c.b16 %v376, %v375
    %v389 = vpack.c.b16 %v378, %v377
    %v390 = vpack.c.b16 %v380, %v379
    %v391 = vpack.c.b16 %v382, %v381
    %v392 = vpack.c.b16 %v384, %v383
    %401 = vmatprep.subr.bf16.mxu0 0
    %402 = vmatpush1.bf16.msra.mxu0 %v385
    %403 = vmatprep.subr.bf16.mxu0 0
    %404 = vmatpush1.bf16.msra.mxu0 %v386
    %405 = vmatprep.subr.bf16.mxu0 0
    %406 = vmatpush1.bf16.msra.mxu0 %v387
    %407 = vmatprep.subr.bf16.mxu0 0
    %408 = vmatpush1.bf16.msra.mxu0 %v388
    %409 = vmatprep.subr.bf16.mxu0 0
    %410 = vmatpush1.bf16.msra.mxu0 %v389
    %411 = vmatprep.subr.bf16.mxu0 0
    %412 = vmatpush1.bf16.msra.mxu0 %v390
    %413 = vmatprep.subr.bf16.mxu0 0
    %414 = vmatpush1.bf16.msra.mxu0 %v391
    %415 = vmatprep.subr.bf16.mxu0 0
    %416 = vmatpush1.bf16.msra.mxu0 %v392
    %417 = vmatprep.subr.bf16.mxu0 0
    %418 = vmatpush1.bf16.msra.mxu0 0
    %419 = vmatprep.subr.bf16.mxu0 0
    %420 = vmatpush1.bf16.msra.mxu0 0
    %421 = vmatprep.subr.bf16.mxu0 0
    %422 = vmatpush1.bf16.msra.mxu0 0
    %423 = vmatprep.subr.bf16.mxu0 0
    %424 = vmatpush1.bf16.msra.mxu0 0
    %425 = vmatprep.subr.bf16.mxu0 0
    %426 = vmatpush1.bf16.msra.mxu0 0
    %427 = vmatprep.subr.bf16.mxu0 0
    %428 = vmatpush1.bf16.msra.mxu0 0
    %429 = vmatprep.subr.bf16.mxu0 0
    %430 = vmatpush1.bf16.msra.mxu0 0
    %431 = vmatprep.subr.bf16.mxu0 0
    %432 = vmatpush1.bf16.msra.mxu0 0
    %433 = vmatprep.mubr.bf16.mxu0 0
    %434 = vmatmul.mubr.bf16.gmra.mrb[0].mxu0 %v329
    %v435 = vpop.f32.mrb[0].mxu0
    %v436 = vadd.f32 %v351, %v435
    %v437 = vpop.f32.mrb[0].mxu0
    %v438 = vpop.f32.mrb[0].mxu0
    %v439 = vpop.f32.mrb[0].mxu0
    %440 = vdwg.mxu0
    %s441 = sld [smem:[#allocation14 + $0x2]]
    %vm442 = vcmp.ge.f32.partialorder %v436, 0.0
    %v443 = vstv %s441
    %v444 = vmul.f32 %v443, %v436
    %v445 = vsel %vm442, %v436, %v444
    %v446 = vpack.c.bf16 %v445, %v445
    %v447 = vld [vmem:[#allocation11] sm:$0xf]
    %v448 = vld [vmem:[#allocation11 + $0x4] sm:$0xf]
    %v449 = vld [vmem:[#allocation11 + $0x8] sm:$0xf]
    %v450 = vld [vmem:[#allocation11 + $0xc] sm:$0xf]
    %v451 = vld [vmem:[#allocation11 + $0x10] sm:$0xf]
    %v452 = vld [vmem:[#allocation11 + $0x14] sm:$0xf]
    %v453 = vld [vmem:[#allocation11 + $0x18] sm:$0xf]
    %v454 = vld [vmem:[#allocation11 + $0x1c] sm:$0xf]
    %v455 = vld [vmem:[#allocation11 + $0x20] sm:$0xf]
    %v456 = vld [vmem:[#allocation11 + $0x24] sm:$0xf]
    %v457 = vld [vmem:[#allocation11 + $0x28] sm:$0xf]
    %v458 = vld [vmem:[#allocation11 + $0x2c] sm:$0xf]
    %v459 = vld [vmem:[#allocation11 + $0x30] sm:$0xf]
    %v460 = vld [vmem:[#allocation11 + $0x34] sm:$0xf]
    %v461 = vld [vmem:[#allocation11 + $0x38] sm:$0xf]
    %v462 = vld [vmem:[#allocation11 + $0x3c] sm:$0xf]
    %v463 = vld [vmem:[%s8] sm:$0x1]
    %v465 = vlaneseq
    %v466 = vshrl.u32 %v465, 7
    %v467 = vsub.s32 0, %v466
    %v468 = vrot.slane %v463, %v467
    %v486 = vunpack.c.l.b16 %v447
    %v487 = vunpack.c.l.b16 %v448
    %v488 = vunpack.c.l.b16 %v449
    %v489 = vunpack.c.l.b16 %v450
    %v490 = vunpack.c.l.b16 %v451
    %v491 = vunpack.c.l.b16 %v452
    %v492 = vunpack.c.l.b16 %v453
    %v493 = vunpack.c.l.b16 %v454
    %v494 = vunpack.c.l.b16 %v455
    %v495 = vunpack.c.l.b16 %v456
    %v496 = vunpack.c.l.b16 %v457
    %v497 = vunpack.c.l.b16 %v458
    %v498 = vunpack.c.l.b16 %v459
    %v499 = vunpack.c.l.b16 %v460
    %v500 = vunpack.c.l.b16 %v461
    %v501 = vunpack.c.l.b16 %v462
    %v502 = vpack.c.b16 %v487, %v486
    %v503 = vpack.c.b16 %v489, %v488
    %v504 = vpack.c.b16 %v491, %v490
    %v505 = vpack.c.b16 %v493, %v492
    %v506 = vpack.c.b16 %v495, %v494
    %v507 = vpack.c.b16 %v497, %v496
    %v508 = vpack.c.b16 %v499, %v498
    %v509 = vpack.c.b16 %v501, %v500
    %518 = vmatprep.subr.bf16.mxu0 0
    %519 = vmatpush1.bf16.msra.mxu0 %v502
    %520 = vmatprep.subr.bf16.mxu0 0
    %521 = vmatpush1.bf16.msra.mxu0 %v503
    %522 = vmatprep.subr.bf16.mxu0 0
    %523 = vmatpush1.bf16.msra.mxu0 %v504
    %524 = vmatprep.subr.bf16.mxu0 0
    %525 = vmatpush1.bf16.msra.mxu0 %v505
    %526 = vmatprep.subr.bf16.mxu0 0
    %527 = vmatpush1.bf16.msra.mxu0 %v506
    %528 = vmatprep.subr.bf16.mxu0 0
    %529 = vmatpush1.bf16.msra.mxu0 %v507
    %530 = vmatprep.subr.bf16.mxu0 0
    %531 = vmatpush1.bf16.msra.mxu0 %v508
    %532 = vmatprep.subr.bf16.mxu0 0
    %533 = vmatpush1.bf16.msra.mxu0 %v509
    %534 = vmatprep.subr.bf16.mxu0 0
    %535 = vmatpush1.bf16.msra.mxu0 0
    %536 = vmatprep.subr.bf16.mxu0 0
    %537 = vmatpush1.bf16.msra.mxu0 0
    %538 = vmatprep.subr.bf16.mxu0 0
    %539 = vmatpush1.bf16.msra.mxu0 0
    %540 = vmatprep.subr.bf16.mxu0 0
    %541 = vmatpush1.bf16.msra.mxu0 0
    %542 = vmatprep.subr.bf16.mxu0 0
    %543 = vmatpush1.bf16.msra.mxu0 0
    %544 = vmatprep.subr.bf16.mxu0 0
    %545 = vmatpush1.bf16.msra.mxu0 0
    %546 = vmatprep.subr.bf16.mxu0 0
    %547 = vmatpush1.bf16.msra.mxu0 0
    %548 = vmatprep.subr.bf16.mxu0 0
    %549 = vmatpush1.bf16.msra.mxu0 0
    %550 = vmatprep.mubr.bf16.mxu0 0
    %551 = vmatmul.mubr.bf16.gmra.mrb[0].mxu0 %v446
    %v552 = vpop.f32.mrb[0].mxu0
    %v553 = vadd.f32 %v468, %v552
    %v554 = vpop.f32.mrb[0].mxu0
    %v555 = vpop.f32.mrb[0].mxu0
    %v556 = vpop.f32.mrb[0].mxu0
    %557 = vdwg.mxu0
    %s558 = sld [smem:[#allocation14 + $0x3]]
    %vm559 = vcmp.ge.f32.partialorder %v553, 0.0
    %v560 = vstv %s558
    %v561 = vmul.f32 %v560, %v553
    %v562 = vsel %vm559, %v553, %v561
    %563 = vst.msk [vmem:[#allocation15] sm:$0xff] %vm163, %v562
    %v564 = vpack.c.bf16 %v562, %v562
    %v565 = vld [vmem:[#allocation12] sm:$0xf]
    %v566 = vld [vmem:[#allocation12 + $0x4] sm:$0xf]
    %v567 = vld [vmem:[#allocation12 + $0x8] sm:$0xf]
    %v568 = vld [vmem:[#allocation12 + $0xc] sm:$0xf]
    %v569 = vld [vmem:[#allocation12 + $0x10] sm:$0xf]
    %v570 = vld [vmem:[#allocation12 + $0x14] sm:$0xf]
    %v571 = vld [vmem:[#allocation12 + $0x18] sm:$0xf]
    %v572 = vld [vmem:[#allocation12 + $0x1c] sm:$0xf]
    %v573 = vld [vmem:[#allocation12 + $0x20] sm:$0xf]
    %v574 = vld [vmem:[#allocation12 + $0x24] sm:$0xf]
    %v575 = vld [vmem:[#allocation12 + $0x28] sm:$0xf]
    %v576 = vld [vmem:[#allocation12 + $0x2c] sm:$0xf]
    %v577 = vld [vmem:[#allocation12 + $0x30] sm:$0xf]
    %v578 = vld [vmem:[#allocation12 + $0x34] sm:$0xf]
    %v579 = vld [vmem:[#allocation12 + $0x38] sm:$0xf]
    %v580 = vld [vmem:[#allocation12 + $0x3c] sm:$0xf]
    %v581 = vld [vmem:[%s10] sm:$0x1]
    %v583 = vlaneseq
    %v584 = vshrl.u32 %v583, 7
    %v585 = vsub.s32 0, %v584
    %v586 = vrot.slane %v581, %v585
    %v604 = vunpack.c.l.b16 %v565
    %v605 = vunpack.c.l.b16 %v566
    %v606 = vunpack.c.l.b16 %v567
    %v607 = vunpack.c.l.b16 %v568
    %v608 = vunpack.c.l.b16 %v569
    %v609 = vunpack.c.l.b16 %v570
    %v610 = vunpack.c.l.b16 %v571
    %v611 = vunpack.c.l.b16 %v572
    %v612 = vunpack.c.l.b16 %v573
    %v613 = vunpack.c.l.b16 %v574
    %v614 = vunpack.c.l.b16 %v575
    %v615 = vunpack.c.l.b16 %v576
    %v616 = vunpack.c.l.b16 %v577
    %v617 = vunpack.c.l.b16 %v578
    %v618 = vunpack.c.l.b16 %v579
    %v619 = vunpack.c.l.b16 %v580
    %v620 = vpack.c.b16 %v605, %v604
    %v621 = vpack.c.b16 %v607, %v606
    %v622 = vpack.c.b16 %v609, %v608
    %v623 = vpack.c.b16 %v611, %v610
    %v624 = vpack.c.b16 %v613, %v612
    %v625 = vpack.c.b16 %v615, %v614
    %v626 = vpack.c.b16 %v617, %v616
    %v627 = vpack.c.b16 %v619, %v618
    %636 = vmatprep.subr.bf16.mxu0 0
    %637 = vmatpush1.bf16.msra.mxu0 %v620
    %638 = vmatprep.subr.bf16.mxu0 0
    %639 = vmatpush1.bf16.msra.mxu0 %v621
    %640 = vmatprep.subr.bf16.mxu0 0
    %641 = vmatpush1.bf16.msra.mxu0 %v622
    %642 = vmatprep.subr.bf16.mxu0 0
    %643 = vmatpush1.bf16.msra.mxu0 %v623
    %644 = vmatprep.subr.bf16.mxu0 0
    %645 = vmatpush1.bf16.msra.mxu0 %v624
    %646 = vmatprep.subr.bf16.mxu0 0
    %647 = vmatpush1.bf16.msra.mxu0 %v625
    %648 = vmatprep.subr.bf16.mxu0 0
    %649 = vmatpush1.bf16.msra.mxu0 %v626
    %650 = vmatprep.subr.bf16.mxu0 0
    %651 = vmatpush1.bf16.msra.mxu0 %v627
    %652 = vmatprep.subr.bf16.mxu0 0
    %653 = vmatpush1.bf16.msra.mxu0 0
    %654 = vmatprep.subr.bf16.mxu0 0
    %655 = vmatpush1.bf16.msra.mxu0 0
    %656 = vmatprep.subr.bf16.mxu0 0
    %657 = vmatpush1.bf16.msra.mxu0 0
    %658 = vmatprep.subr.bf16.mxu0 0
    %659 = vmatpush1.bf16.msra.mxu0 0
    %660 = vmatprep.subr.bf16.mxu0 0
    %661 = vmatpush1.bf16.msra.mxu0 0
    %662 = vmatprep.subr.bf16.mxu0 0
    %663 = vmatpush1.bf16.msra.mxu0 0
    %664 = vmatprep.subr.bf16.mxu0 0
    %665 = vmatpush1.bf16.msra.mxu0 0
    %666 = vmatprep.subr.bf16.mxu0 0
    %667 = vmatpush1.bf16.msra.mxu0 0
    %668 = vmatprep.mubr.bf16.mxu0 0
    %669 = vmatmul.mubr.bf16.gmra.mrb[0].mxu0 %v564
    %v670 = vpop.f32.mrb[0].mxu0
    %v671 = vadd.f32 %v586, %v670
    %v672 = vpop.f32.mrb[0].mxu0
    %v673 = vpop.f32.mrb[0].mxu0
    %v674 = vpop.f32.mrb[0].mxu0
    %675 = vdwg.mxu0
    %676 = vmax.xlane.f32.xlu0 %v671
    %v677 = vpop.xlane.xlu0 %676
    %v678 = vsub.f32 %v671, %v677
    %v679 = vmul.f32 %v678, 1.442695
    %v680 = vpow.pop %v679
    %681 = vadd.xlane.f32.xlu0 %v680
    %v682 = vpop.xlane.xlu0 %681
    %v683 = vlog2.pop %v682
    %v684 = vmul.f32 %v683, 0.6931472
    %v685 = vsub.f32 %v678, %v684
    %vm686 = vcmask 130048
    %687 = vst.msk [vmem:[#allocation16] sm:$0xff] %vm686, %v685
    // Predicated region
    $region78: #{tpu_custom_call.1} parent=1 // pred_check
      _
    $region79: #{tpu_custom_call.1} parent=1 // pred_check_branch
      %689 = sbr.rel (0) target = $region81
    $region80: #{tpu_custom_call.1} parent=1 // pred_region
      %s691 = ssub.s32 128, 128
      %692 = vsyncadd [#allocation4], %s691
      %s694 = sshll.u32 [#allocation15], 4
      %s695 = int_to_ptr.vmem [resolvable:$true] %s694
      %697 = dma.vmem_to_hbm [thread:$0]  %s695, 128, %s12, [#allocation4]
    $region81: #{tpu_custom_call.1} parent=1 // pred_fallthru
      _
    // Predicated region
    $region82: #{tpu_custom_call.1} parent=1 // pred_check
      _
    $region83: #{tpu_custom_call.1} parent=1 // pred_check_branch
      %699 = sbr.rel (0) target = $region85
    $region84: #{tpu_custom_call.1} parent=1 // pred_region
      %s701 = ssub.s32 128, 128
      %702 = vsyncadd [#allocation17], %s701
      %s704 = sshll.u32 [#allocation16], 4
      %s705 = int_to_ptr.vmem [resolvable:$true] %s704
      %707 = dma.vmem_to_hbm [thread:$0]  %s705, 128, %s13, [#allocation17]
    $region85: #{tpu_custom_call.1} parent=1 // pred_fallthru
      _
    // Predicated region
    $region86: #{tpu_custom_call.1} parent=1 // pred_check
      _
    $region87: #{tpu_custom_call.1} parent=1 // pred_check_branch
      %709 = sbr.rel (0) target = $region89
    $region88: #{tpu_custom_call.1} parent=1 // pred_region
      %710 = dma.done [#allocation4], 128
    $region89: #{tpu_custom_call.1} parent=1 // pred_fallthru
      _
    // Predicated region
    $region90: #{tpu_custom_call.1} parent=1 // pred_check
      _
    $region91: #{tpu_custom_call.1} parent=1 // pred_check_branch
      %712 = sbr.rel (0) target = $region93
    $region92: #{tpu_custom_call.1} parent=1 // pred_region
      %713 = dma.done [#allocation17], 128
    $region93: #{tpu_custom_call.1} parent=1 // pred_fallthru
      _
    %714 = vsyncpa [#allocation3], 1
    %715 = vsyncpa [#allocation7], 1
    %716 = vsyncpa [#allocation10], 1
    %717 = vsyncpa [#allocation13], 1
    %718 = vsyncpa [#allocation4], 1
    %719 = vsyncpa [#allocation17], 1
    %720 = vsyncpa [#allocation5], 1

</llo_original>
